<compile_context>
chip_gen: v5e
topology: v5e:2x2
jax: 0.10.0
libtpu: 0.0.40
codegen_flags: <defaults>
</compile_context>

<pallas_src>
import jax
import jax.numpy as jnp
from jax import lax
from jax.experimental import pallas as pl
from jax.experimental.pallas import tpu as pltpu

_LANES = 128
_MAX_TILE_ROWS = 8192   # (8192,128) f32 tile = 4 MiB/input; 2 in x 2 bufs = 16 MiB
_N_ACC = 4              # independent partial accumulators
_FORI_UNROLL = 2        # sublane-chunks per unrolled fori body = _N_ACC * _FORI_UNROLL


def _row_chunk_for(dtype):
    # Sub-32-bit dtypes pack along sublanes: keep each chunk one full packed vreg.
    return {4: 8, 2: 16, 1: 32}.get(jnp.dtype(dtype).itemsize, 8)


def _num_tensorcores():
    # TODO(synk): best-effort TensorCore-count query; falls back to 1 (correct
    # for v5e/v6e) if this jax build's TpuInfo does not expose the field.
    try:
        info = pltpu.get_tpu_info()
    except Exception:
        return 1
    for attr in ("num_cores", "num_tensorcores", "tensorcores_per_chip",
                 "cores_per_chip"):
        v = getattr(info, attr, None)
        if isinstance(v, int) and v in (1, 2):
            return v
    return 1


def _make_mse_kernel(row_chunk, tile_rows, rows, tiles_per_core, need_mask,
                     multicore):
    n_chunks = tile_rows // row_chunk
    n_groups = n_chunks // _N_ACC
    n_rem = n_chunks - n_groups * _N_ACC
    raxis = 1 if multicore else 0  # reduction (inner) grid axis

    def kernel(pred_ref, tgt_ref, out_ref, acc_ref):
        j = pl.program_id(raxis)

        @pl.when(j == 0)
        def _():
            acc_ref[...] = jnp.zeros_like(acc_ref)

        if multicore:
            blk = pl.program_id(0) * tiles_per_core + j
        else:
            blk = j
        block_row_start = blk * tile_rows

        def add_chunk(acc, k):
            start = k * row_chunk
            if not isinstance(start, int):
                start = pl.multiple_of(start, row_chunk)
            d = (pred_ref[pl.ds(start, row_chunk), :].astype(jnp.float32)
                 - tgt_ref[pl.ds(start, row_chunk), :].astype(jnp.float32))
            sq = d * d
            if need_mask:
                # rows is a multiple of row_chunk, so each chunk is valid or
                # invalid as a whole -> one scalar predicate, no iota mask.
                sq = jnp.where(block_row_start + k * row_chunk < rows, sq, 0.0)
            return acc + sq

        zero = jnp.zeros((row_chunk, _LANES), jnp.float32)
        accs = (zero,) * _N_ACC
        if n_groups > 0:
            def body(g, carry):
                k0 = g * _N_ACC
                return tuple(add_chunk(carry[a], k0 + a) for a in range(_N_ACC))
            accs = lax.fori_loop(0, n_groups, body, accs, unroll=_FORI_UNROLL)
        accs = list(accs)
        for r in range(n_rem):  # statically-known remainder (< _N_ACC chunks)
            k = n_groups * _N_ACC + r
            accs[r % _N_ACC] = add_chunk(accs[r % _N_ACC], k)

        acc_ref[...] += (accs[0] + accs[1]) + (accs[2] + accs[3])

        # Single cross-lane reduce + SMEM scalar store on the final step only.
        @pl.when(j == pl.num_programs(raxis) - 1)
        def _():
            out_ref[0, 0] = jnp.sum(acc_ref[...])

    return kernel


def mse_loss(pred, target, weight=1.0):
    assert pred.shape == target.shape, "pred/target shape mismatch"
    n = pred.size
    if n == 0:
        return jnp.float32(0.0)

    dtype = pred.dtype
    itemsize = jnp.dtype(dtype).itemsize
    row_chunk = _row_chunk_for(dtype)
    chunk_elems = row_chunk * _LANES

    # Flatten WITHOUT casting (bf16/fp16 stream at native width; the f32
    # upcast happens in-kernel).
    flat_pred = jnp.reshape(pred, (-1,))
    flat_tgt = jnp.reshape(target, (-1,))

    n_main = (n // chunk_elems) * chunk_elems
    tail_sum = jnp.float32(0.0)
    if n_main < n:
        # Tail (< chunk_elems elements) handled with plain jnp instead of
        # padding whole arrays.
        tp = flat_pred[n_main:].astype(jnp.float32)
        tt = flat_tgt[n_main:].astype(jnp.float32)
        tail_sum = jnp.sum((tp - tt) ** 2)

    if n_main == 0:
        total = tail_sum
    else:
        rows = n_main // _LANES  # multiple of row_chunk
        # Zero-copy (pure bitcast) when n_main == n; a single prefix copy
        # otherwise (cheaper than padding both full arrays).
        p2d = flat_pred[:n_main].reshape(rows, _LANES)
        t2d = flat_tgt[:n_main].reshape(rows, _LANES)

        tile_rows = min(_MAX_TILE_ROWS, rows)  # multiple of row_chunk
        tiles_total = pl.cdiv(rows, tile_rows)

        num_cores = min(_num_tensorcores(), tiles_total)
        multicore = num_cores > 1

        if multicore:
            tiles_per_core = pl.cdiv(tiles_total, num_cores)
            grid = (num_cores, tiles_per_core)

            def in_map(i, j):
                # Clamp so wasted tail steps stay in bounds; their contribution
                # is zeroed by the in-kernel chunk mask.
                blk = i * tiles_per_core + j
                return (jnp.minimum(blk, tiles_total - 1), 0)

            out_map = lambda i, j: (i, 0)
            need_mask = (rows % tile_rows != 0) or (
                num_cores * tiles_per_core != tiles_total)
            dim_sem = (getattr(pltpu, "CORE_PARALLEL", "parallel"), "arbitrary")
        else:
            tiles_per_core = tiles_total
            grid = (tiles_total,)
            in_map = lambda j: (j, 0)
            out_map = lambda j: (0, 0)
            need_mask = rows % tile_rows != 0
            dim_sem = ("arbitrary",)

        tile_bytes = tile_rows * _LANES * itemsize
        # 2 inputs x 2 pipeline buffers + slack; capped so it also fits v7x's
        # 64 MiB physical VMEM (default double-buffering only — no deeper
        # pipelining needed once tiles are multi-MiB).
        vmem_limit = int(min(max(4 * tile_bytes + (4 << 20), 8 << 20), 32 << 20))

        kernel = _make_mse_kernel(row_chunk, tile_rows, rows, tiles_per_core,
                                  need_mask, multicore)
        partials = pl.pallas_call(
            kernel,
            out_shape=jax.ShapeDtypeStruct((num_cores, 1), jnp.float32),
            grid_spec=pltpu.PrefetchScalarGridSpec(
                num_scalar_prefetch=0,
                grid=grid,
                in_specs=[
                    pl.BlockSpec((tile_rows, _LANES), in_map),
                    pl.BlockSpec((tile_rows, _LANES), in_map),
                ],
                out_specs=pl.BlockSpec((1, 1), out_map,
                                       memory_space=pltpu.SMEM),
                scratch_shapes=[pltpu.VMEM((row_chunk, _LANES), jnp.float32)],
            ),
            compiler_params=pltpu.CompilerParams(
                dimension_semantics=dim_sem,
                vmem_limit_bytes=vmem_limit,
            ),
            cost_estimate=pl.CostEstimate(
                flops=3 * n_main,
                transcendentals=0,
                bytes_accessed=2 * n_main * itemsize + num_cores * 4,
            ),
        )(p2d, t2d)
        total = jnp.sum(partials) + tail_sum

    return jnp.float32(weight) * (total / jnp.float32(n))


if __name__ == "__main__":
    key = jax.random.PRNGKey(0)
    k1, k2 = jax.random.split(key)
    # NCHW, consistent with PyTorch conv-style tensors.
    pred = jax.random.normal(k1, (2, 4, 16, 16), dtype=jnp.float32)
    target = jax.random.normal(k2, (2, 4, 16, 16), dtype=jnp.float32)

    weight = 1.0  # matches MSELoss() default __init__
    loss = mse_loss(pred, target, weight=weight)
    loss = jax.block_until_ready(loss)

    # Reference check against plain JAX.
    ref = weight * jnp.mean((pred - target) ** 2)
    assert jnp.allclose(loss, ref, rtol=1e-5, atol=1e-6), (loss, ref)

    print("KERNEL_OK")
</pallas_src>

<mosaic_0001>
module attributes {stable_mosaic.version = 11 : i64} {
  func.func @kernel(%arg0: i32, %arg1: memref<16x128xf32, #tpu.memory_space<vmem>>, %arg2: memref<16x128xf32, #tpu.memory_space<vmem>>, %arg3: memref<1x1xf32, #tpu.memory_space<smem>>, %arg4: memref<8x128xf32, #tpu.memory_space<vmem>>) attributes {dimension_semantics = [#tpu.dimension_semantics<arbitrary>], iteration_bounds = array<i64: 1>, scalar_prefetch = 0 : i64, scratch_operands = 1 : i64, tpu.core_type = #tpu.core_type<tc>, window_params = [{transform_indices = @transform_0, window_bounds = array<i64: 16, 128>}, {transform_indices = @transform_1, window_bounds = array<i64: 16, 128>}, {transform_indices = @transform_2, window_bounds = array<i64: 1, 1>}]} {
    %c0_i32 = arith.constant 0 : i32
    %0 = arith.cmpi eq, %arg0, %c0_i32 : i32
    %1 = arith.extui %0 : i1 to i32
    %c0_i32_0 = arith.constant 0 : i32
    %2 = arith.cmpi ne, %1, %c0_i32_0 : i32
    scf.if %2 {
      %cst_13 = arith.constant 0.000000e+00 : f32
      %23 = vector.broadcast %cst_13 : f32 to vector<8x128xf32>
      %c0_14 = arith.constant 0 : index
      %c0_15 = arith.constant 0 : index
      %24 = vector.load %arg4[%c0_14, %c0_15] : memref<8x128xf32, #tpu.memory_space<vmem>>, vector<8x128xf32>
      tpu.vector_store %arg4[%c0_14, %c0_15], %23 {strides = array<i32>} : memref<8x128xf32, #tpu.memory_space<vmem>>, vector<8x128xf32>,
    } else {
    }
    %cst = arith.constant 0.000000e+00 : f32
    %3 = vector.broadcast %cst : f32 to vector<8x128xf32>
    %c0 = arith.constant 0 : index
    %c0_1 = arith.constant 0 : index
    %4 = vector.load %arg1[%c0, %c0_1] : memref<16x128xf32, #tpu.memory_space<vmem>>, vector<8x128xf32>
    %c0_2 = arith.constant 0 : index
    %c0_3 = arith.constant 0 : index
    %5 = vector.load %arg2[%c0_2, %c0_3] : memref<16x128xf32, #tpu.memory_space<vmem>>, vector<8x128xf32>
    %6 = arith.subf %4, %5 : vector<8x128xf32>
    %7 = arith.mulf %6, %6 : vector<8x128xf32>
    %8 = arith.addf %3, %7 : vector<8x128xf32>
    %c8 = arith.constant 8 : index
    %c0_4 = arith.constant 0 : index
    %9 = vector.load %arg1[%c8, %c0_4] : memref<16x128xf32, #tpu.memory_space<vmem>>, vector<8x128xf32>
    %c8_5 = arith.constant 8 : index
    %c0_6 = arith.constant 0 : index
    %10 = vector.load %arg2[%c8_5, %c0_6] : memref<16x128xf32, #tpu.memory_space<vmem>>, vector<8x128xf32>
    %11 = arith.subf %9, %10 : vector<8x128xf32>
    %12 = arith.mulf %11, %11 : vector<8x128xf32>
    %13 = arith.addf %3, %12 : vector<8x128xf32>
    %c0_7 = arith.constant 0 : index
    %c0_8 = arith.constant 0 : index
    %14 = vector.load %arg4[%c0_7, %c0_8] : memref<8x128xf32, #tpu.memory_space<vmem>>, vector<8x128xf32>
    %15 = arith.addf %8, %13 : vector<8x128xf32>
    %16 = arith.addf %3, %3 : vector<8x128xf32>
    %17 = arith.addf %15, %16 : vector<8x128xf32>
    %18 = arith.addf %14, %17 : vector<8x128xf32>
    %c0_9 = arith.constant 0 : index
    %c0_10 = arith.constant 0 : index
    %19 = vector.load %arg4[%c0_9, %c0_10] : memref<8x128xf32, #tpu.memory_space<vmem>>, vector<8x128xf32>
    tpu.vector_store %arg4[%c0_9, %c0_10], %18 {strides = array<i32>} : memref<8x128xf32, #tpu.memory_space<vmem>>, vector<8x128xf32>,
    %c0_i32_11 = arith.constant 0 : i32
    %20 = arith.cmpi eq, %arg0, %c0_i32_11 : i32
    %21 = arith.extui %20 : i1 to i32
    %c0_i32_12 = arith.constant 0 : i32
    %22 = arith.cmpi ne, %21, %c0_i32_12 : i32
    scf.if %22 {
      %c0_13 = arith.constant 0 : index
      %c0_14 = arith.constant 0 : index
      %23 = vector.load %arg4[%c0_13, %c0_14] : memref<8x128xf32, #tpu.memory_space<vmem>>, vector<8x128xf32>
      %24 = vector.shape_cast %23 : vector<8x128xf32> to vector<1x8x128xf32>
      %cst_15 = arith.constant dense<0.000000e+00> : vector<1xf32>
      %25 = vector.multi_reduction <add>, %24, %cst_15 [1, 2] : vector<1x8x128xf32> to vector<1xf32>
      %26 = vector.shape_cast %25 : vector<1xf32> to vector<1x1x1xf32>
      %27 = vector.extract %26[0, 0, 0] : f32 from vector<1x1x1xf32>
      %c0_16 = arith.constant 0 : index
      %c0_17 = arith.constant 0 : index
      %28 = memref.load %arg3[%c0_16, %c0_17] : memref<1x1xf32, #tpu.memory_space<smem>>
      memref.store %27, %arg3[%c0_16, %c0_17] : memref<1x1xf32, #tpu.memory_space<smem>>
    } else {
    }
    return
  }
  func.func @transform_0(%arg0: i32) -> (i32, i32) {
    %c0_i32 = arith.constant 0 : i32
    %c0_i32_0 = arith.constant 0 : i32
    return %arg0, %c0_i32 : i32, i32
  }
  func.func @transform_1(%arg0: i32) -> (i32, i32) {
    %c0_i32 = arith.constant 0 : i32
    %c0_i32_0 = arith.constant 0 : i32
    return %arg0, %c0_i32 : i32, i32
  }
  func.func @transform_2(%arg0: i32) -> (i32, i32) {
    %c0_i32 = arith.constant 0 : i32
    %c0_i32_0 = arith.constant 0 : i32
    %c0_i32_1 = arith.constant 0 : i32
    return %c0_i32, %c0_i32_0 : i32, i32
  }
}

</mosaic_0001>

<llo_original>
// kernel: tpu_custom_call.1
$region0: #{tpu_custom_call.1}
  #allocation0 [shape = 'u32[]', space=smem, size = 0x4, offset = 0x4, fixed_abs, tag = 'smem constant byte address 0x4 - core index']
  #allocation1 [shape = 'u32[72,128]{1,0:T(1,128)}', space=vmem, size = 0x9000, scoped, tag = 'internal scratch']
  #allocation2 [shape = 'f32[8,128]{1,0:T(8,128)}', space=vmem, size = 0x1000, scoped, tag = 'scratch operand']
  %s0 = inlined_call_operand.hbm [shape: f32[16,128], index: 0, kind: input, shape index: {}]
  %s1 = inlined_call_operand.hbm [shape: f32[16,128], index: 1, kind: input, shape index: {}]
  %s2 = inlined_call_operand.hbm [shape: f32[1,1], index: 2, kind: output, shape index: {}]
  %s3 = sld [smem:[#allocation0]]
  $region34: #{tpu_custom_call.1} parent=0
    _
  %s5 = ssub.s32 1, %s3
  %s6 = scalar_select 0, %s5, %s3
  $region1: #{tpu_custom_call.1} parent=0
    #allocation3 [shape = 'u8[8192]{0}', space=vmem, size = 0x2000, scoped, tag = 'input window, operand 0, single buffered']
    #allocation4 [shape = 's32[1]{0}', space=sflag, size = 0x4, scoped, tag = 'scoped memory for tpu_custom_call.1']
    #allocation5 [shape = 's32[1]{0}', space=sflag, size = 0x4, scoped, tag = 'scoped memory for tpu_custom_call.1']
    #allocation6 [shape = 'u8[8192]{0}', space=vmem, size = 0x2000, scoped, tag = 'input window, operand 1, single buffered']
    #allocation7 [shape = 's32[1]{0}', space=sflag, size = 0x4, scoped, tag = 'scoped memory for tpu_custom_call.1']
    #allocation8 [shape = 'u8[512]{0}', space=smem, size = 0x200, scoped, tag = 'output window, operand 0, single buffered']
    %7 = vsyncpa [#allocation4], 0
    %8 = vsyncpa [#allocation7], 0
    %9 = vsyncpa [#allocation5], 0
    // Predicated region
    $region2: #{tpu_custom_call.1} parent=1 // pred_check
      _
    $region3: #{tpu_custom_call.1} parent=1 // pred_check_branch
      %11 = sbr.rel (0) target = $region5
    $region4: #{tpu_custom_call.1} parent=1 // pred_region
      %13 = vsyncadd [#allocation4], 0
      %s14 = sshll.u32 %s0, 4
      %s15 = int_to_ptr.hbm [resolvable:$true] %s14
      %s16 = sshll.u32 [#allocation3], 4
      %s17 = int_to_ptr.vmem [resolvable:$true] %s16
      %22 = dma.hbm_to_vmem [thread:$0]  %s15, 256, %s17, [#allocation4], 128, 128, 8
    $region5: #{tpu_custom_call.1} parent=1 // pred_fallthru
      _
    // Predicated region
    $region6: #{tpu_custom_call.1} parent=1 // pred_check
      _
    $region7: #{tpu_custom_call.1} parent=1 // pred_check_branch
      %24 = sbr.rel (0) target = $region9
    $region8: #{tpu_custom_call.1} parent=1 // pred_region
      %26 = vsyncadd [#allocation7], 0
      %s27 = sshll.u32 %s1, 4
      %s28 = int_to_ptr.hbm [resolvable:$true] %s27
      %s29 = sshll.u32 [#allocation6], 4
      %s30 = int_to_ptr.vmem [resolvable:$true] %s29
      %35 = dma.hbm_to_vmem [thread:$0]  %s28, 256, %s30, [#allocation7], 128, 128, 8
    $region9: #{tpu_custom_call.1} parent=1 // pred_fallthru
      _
    // Predicated region
    $region10: #{tpu_custom_call.1} parent=1 // pred_check
      _
    $region11: #{tpu_custom_call.1} parent=1 // pred_check_branch
      %37 = sbr.rel (0) target = $region13
    $region12: #{tpu_custom_call.1} parent=1 // pred_region
      %39 = dma.done [#allocation4], 256
    $region13: #{tpu_custom_call.1} parent=1 // pred_fallthru
      _
    // Predicated region
    $region14: #{tpu_custom_call.1} parent=1 // pred_check
      _
    $region15: #{tpu_custom_call.1} parent=1 // pred_check_branch
      %41 = sbr.rel (0) target = $region17
    $region16: #{tpu_custom_call.1} parent=1 // pred_region
      %43 = dma.done [#allocation7], 256
    $region17: #{tpu_custom_call.1} parent=1 // pred_fallthru
      _
    %p44 = scmp.eq.s32.totalorder 0, 0
    // Predicated region
    $region18: #{tpu_custom_call.1} parent=1 // pred_check
      %p45 = pneg %p44
    $region19: #{tpu_custom_call.1} parent=1 // pred_check_branch
      %47 = sbr.rel (%p45) target = $region21
    $region20: #{tpu_custom_call.1} parent=1 // pred_region
      %48 = vst [vmem:[#allocation2] sm:$0xff] 0.0
    $region21: #{tpu_custom_call.1} parent=1 // pred_fallthru
      _
    %v49 = vld [vmem:[#allocation3] sm:$0xff]
    %v50 = vld [vmem:[#allocation6] sm:$0xff]
    %v51 = vsub.f32 %v49, %v50
    %v52 = vmul.f32 %v51, %v51
    %v53 = vadd.f32 %v52, 0.0
    %v54 = vld [vmem:[#allocation3 + $0x8] sm:$0xff]
    %v55 = vld [vmem:[#allocation6 + $0x8] sm:$0xff]
    %v56 = vsub.f32 %v54, %v55
    %v57 = vmul.f32 %v56, %v56
    %v58 = vadd.f32 %v57, 0.0
    %v59 = vld [vmem:[#allocation2] sm:$0xff]
    %v60 = vadd.f32 %v53, %v58
    %v61 = vadd.f32 %v60, 0.0
    %v62 = vadd.f32 %v59, %v61
    %63 = vst [vmem:[#allocation2] sm:$0xff] %v62
    // Predicated region
    $region22: #{tpu_custom_call.1} parent=1 // pred_check
      %p64 = pneg %p44
    $region23: #{tpu_custom_call.1} parent=1 // pred_check_branch
      %66 = sbr.rel (%p64) target = $region25
    $region24: #{tpu_custom_call.1} parent=1 // pred_region
      %v67 = vld [vmem:[#allocation2] sm:$0xff]
      %68 = vadd.xlane.f32.xlu0 %v67
      %v69 = vpop.xlane.xlu0 %68
      %v70 = vrot.slane %v69, 4
      %v71 = vadd.f32 %v69, %v70
      %v72 = vrot.slane %v71, 2
      %v73 = vadd.f32 %v71, %v72
      %v74 = vrot.slane %v73, 1
      %v75 = vadd.f32 %v73, %v74
      %s76 = vtos %v75
      %s77 = scalar_lea.smem [#allocation8], 0
      %78 = sst [smem:[%s77]] %s76
    $region25: #{tpu_custom_call.1} parent=1 // pred_fallthru
      _
    // Predicated region
    $region26: #{tpu_custom_call.1} parent=1 // pred_check
      _
    $region27: #{tpu_custom_call.1} parent=1 // pred_check_branch
      %80 = sbr.rel (0) target = $region29
    $region28: #{tpu_custom_call.1} parent=1 // pred_region
      %82 = vsyncadd [#allocation5], 0
      %s84 = sshll.u32 %s2, 4
      %s85 = int_to_ptr.hbm [resolvable:$true] %s84
      %87 = dma.smem_to_hbm [#allocation8], 16, %s85, [#allocation5]
    $region29: #{tpu_custom_call.1} parent=1 // pred_fallthru
      _
    // Predicated region
    $region30: #{tpu_custom_call.1} parent=1 // pred_check
      _
    $region31: #{tpu_custom_call.1} parent=1 // pred_check_branch
      %89 = sbr.rel (0) target = $region33
    $region32: #{tpu_custom_call.1} parent=1 // pred_region
      %91 = dma.done [#allocation5], 16
    $region33: #{tpu_custom_call.1} parent=1 // pred_fallthru
      _
    %92 = sfence
    %93 = vsyncpa [#allocation4], 1
    %94 = vsyncpa [#allocation7], 1
    %95 = vsyncpa [#allocation5], 1

</llo_original>
